<compile_context>
chip_gen: v6e
topology: v6e:2x2x1
jax: 0.10.0
libtpu: 0.0.40
codegen_flags: <defaults>
</compile_context>

<pallas_src>
import functools
import math

import jax
import jax.numpy as jnp
from jax import lax
from jax.experimental import pallas as pl
from jax.experimental.pallas import tpu as pltpu

_LANE = 128
_SUBLANE = 8
_MAX_TILE_ROWS = 2048  # 2048*128*4B = 1 MiB per buffer; ~6 MiB total double-buffered VMEM


def _poisson_pointwise(x, t, *, log_input, full, eps):
    """Pointwise Poisson NLL in float32 (native-dtype DMA, f32 math in-kernel)."""
    x = x.astype(jnp.float32)
    t = t.astype(jnp.float32)
    if log_input:
        loss = jnp.exp(x) - t * x
    else:
        loss = x - t * jnp.log(x + jnp.float32(eps))
    if full:
        # Stirling approximation term, added only where target > 1.
        ts = jnp.where(t > 1.0, t, 1.0)
        stirling = ts * jnp.log(ts) - ts + 0.5 * jnp.log(jnp.float32(2.0 * math.pi) * ts)
        loss = loss + jnp.where(t > 1.0, stirling, 0.0)
    return loss


def _partial_sum_kernel(x_ref, y_ref, o_ref, *, tile_rows, valid_rows, need_mask,
                        log_input, full, eps):
    """Per-block (8,128) partial sum of the pointwise loss."""
    l = _poisson_pointwise(x_ref[...], y_ref[...],
                           log_input=log_input, full=full, eps=eps)
    if need_mask:
        # Ragged grid edge: zero out rows past the real (padded) array extent.
        row0 = pl.program_id(0) * tile_rows
        ridx = row0 + lax.broadcasted_iota(jnp.int32, (tile_rows, _LANE), 0)
        l = jnp.where(ridx < valid_rows, l, 0.0)
    part = l.reshape(tile_rows // _SUBLANE, _SUBLANE, _LANE).sum(axis=0)  # VPU adds
    o_ref[...] = part[None, :, :]


def _elementwise_kernel(x_ref, y_ref, o_ref, *, log_input, full, eps):
    """Unreduced ('none') pointwise loss, written in the output (input) dtype."""
    l = _poisson_pointwise(x_ref[...], y_ref[...],
                           log_input=log_input, full=full, eps=eps)
    o_ref[...] = l.astype(o_ref.dtype)


def _to_rows(a, pad_count):
    flat = a.reshape(-1)
    if pad_count:
        # TODO(synk): this concatenate copies the whole operand when the element
        # count is not a multiple of 1024; for very large unaligned inputs a
        # separate tail kernel would avoid the extra HBM pass.
        flat = jnp.concatenate([flat, jnp.zeros((pad_count,), dtype=flat.dtype)])
    return flat.reshape(-1, _LANE)


@functools.partial(jax.jit, static_argnames=("log_input", "full", "eps", "reduction"))
def poisson_nll_loss(log_input_arr, target, *, log_input=True, full=False,
                     eps=1e-8, reduction="mean"):
    if reduction not in ("none", "mean", "sum"):
        raise ValueError(f"unsupported reduction: {reduction}")

    orig_shape = log_input_arr.shape
    n = log_input_arr.size

    chunk = _SUBLANE * _LANE                     # 1024-element alignment
    padded_n = pl.cdiv(n, chunk) * chunk
    pad_count = padded_n - n
    rows = padded_n // _LANE                     # multiple of 8
    tile_rows = min(_MAX_TILE_ROWS, rows)        # multiple of 8
    num_blocks = pl.cdiv(rows, tile_rows)
    need_mask = (rows % tile_rows) != 0          # ragged grid edge block

    x2 = _to_rows(log_input_arr, pad_count)
    y2 = _to_rows(target, pad_count)

    in_specs = [
        pl.BlockSpec((tile_rows, _LANE), lambda i: (i, 0)),
        pl.BlockSpec((tile_rows, _LANE), lambda i: (i, 0)),
    ]
    grid = (num_blocks,)

    if reduction == "none":
        out = pl.pallas_call(
            functools.partial(_elementwise_kernel,
                              log_input=log_input, full=full, eps=eps),
            out_shape=jax.ShapeDtypeStruct((rows, _LANE), log_input_arr.dtype),
            grid=grid,
            in_specs=in_specs,
            out_specs=pl.BlockSpec((tile_rows, _LANE), lambda i: (i, 0)),
            compiler_params=pltpu.CompilerParams(
                dimension_semantics=("parallel",)),
        )(x2, y2)
        flat_out = out.reshape(-1)
        if pad_count:
            flat_out = flat_out[:n]
        return flat_out.reshape(orig_shape)

    partials = pl.pallas_call(
        functools.partial(_partial_sum_kernel, tile_rows=tile_rows,
                          valid_rows=rows, need_mask=need_mask,
                          log_input=log_input, full=full, eps=eps),
        out_shape=jax.ShapeDtypeStruct((num_blocks, _SUBLANE, _LANE), jnp.float32),
        grid=grid,
        in_specs=in_specs,
        out_specs=pl.BlockSpec((1, _SUBLANE, _LANE), lambda i: (i, 0, 0)),
        compiler_params=pltpu.CompilerParams(
            dimension_semantics=("parallel",)),
    )(x2, y2)

    total = jnp.sum(partials)
    if pad_count:
        # Padded (x=0, target=0) elements contribute exp(0) - 0 = 1 each when
        # log_input=True and exactly 0 when log_input=False (Stirling adds 0).
        pad_loss = 1.0 if log_input else 0.0
        total = total - jnp.float32(pad_count * pad_loss)

    if reduction == "sum":
        return total.astype(log_input_arr.dtype)
    # 'mean': divide by the total element count (PyTorch default behavior).
    return (total / jnp.float32(n)).astype(log_input_arr.dtype)


if __name__ == "__main__":
    key = jax.random.PRNGKey(0)
    k1, k2, k3, k4 = jax.random.split(key, 4)

    def ref(x, t, *, log_input=True, full=False, eps=1e-8, reduction="mean"):
        if log_input:
            l = jnp.exp(x) - t * x
        else:
            l = x - t * jnp.log(x + eps)
        if full:
            ts = jnp.where(t > 1, t, 1.0)
            l = l + jnp.where(t > 1,
                              ts * jnp.log(ts) - ts + 0.5 * jnp.log(2 * jnp.pi * ts),
                              0.0)
        if reduction == "mean":
            return jnp.mean(l)
        if reduction == "sum":
            return jnp.sum(l)
        return l

    # (N, C, H, W) = (2, 4, 16, 16): 2048 elements, lane-aligned (no padding path).
    shape = (2, 4, 16, 16)
    log_rate = jax.random.normal(k1, shape, jnp.float32)
    target = jax.random.poisson(k2, 3.0, shape).astype(jnp.float32)

    # Default module config: log_input=True, full=False, reduction='mean'.
    out = jax.block_until_ready(poisson_nll_loss(log_rate, target))
    assert jnp.allclose(out, ref(log_rate, target), rtol=1e-4, atol=1e-4), out

    out_sum = jax.block_until_ready(poisson_nll_loss(log_rate, target, reduction="sum"))
    assert jnp.allclose(out_sum, ref(log_rate, target, reduction="sum"),
                        rtol=1e-4, atol=1e-3)

    out_none = jax.block_until_ready(poisson_nll_loss(log_rate, target, reduction="none"))
    assert out_none.shape == shape
    assert jnp.allclose(out_none, ref(log_rate, target, reduction="none"),
                        rtol=1e-4, atol=1e-4)

    # Non-lane-aligned shape + log_input=False + full=True (eps/Stirling + padding path).
    shape2 = (5, 7)
    rate = jax.random.uniform(k3, shape2, jnp.float32, 0.1, 5.0)
    target2 = jax.random.poisson(k4, 2.0, shape2).astype(jnp.float32)
    out2 = jax.block_until_ready(
        poisson_nll_loss(rate, target2, log_input=False, full=True, reduction="mean"))
    assert jnp.allclose(out2, ref(rate, target2, log_input=False, full=True),
                        rtol=1e-4, atol=1e-4)

    # Multi-block grid with a ragged edge block (exercises the in-kernel row mask).
    shape3 = (3, 2048, 48)
    x3 = jax.random.normal(k1, shape3, jnp.float32) * 0.5
    t3 = jax.random.poisson(k2, 1.5, shape3).astype(jnp.float32)
    out3 = jax.block_until_ready(poisson_nll_loss(x3, t3, reduction="mean"))
    assert jnp.allclose(out3, ref(x3, t3), rtol=1e-4, atol=1e-4)

    print("KERNEL_OK")
</pallas_src>

<mosaic_0001>
module attributes {stable_mosaic.version = 11 : i64} {
  func.func @_partial_sum_kernel(%arg0: i32, %arg1: memref<16x128xf32, #tpu.memory_space<vmem>>, %arg2: memref<16x128xf32, #tpu.memory_space<vmem>>, %arg3: memref<1x8x128xf32, #tpu.memory_space<vmem>>) attributes {dimension_semantics = [#tpu.dimension_semantics<parallel>], iteration_bounds = array<i64: 1>, scalar_prefetch = 0 : i64, scratch_operands = 0 : i64, tpu.core_type = #tpu.core_type<tc>, window_params = [{transform_indices = @transform_0, window_bounds = array<i64: 16, 128>}, {transform_indices = @transform_1, window_bounds = array<i64: 16, 128>}, {transform_indices = @transform_2, window_bounds = array<i64: 1, 8, 128>}]} {
    %c0 = arith.constant 0 : index
    %c0_0 = arith.constant 0 : index
    %0 = vector.load %arg1[%c0, %c0_0] : memref<16x128xf32, #tpu.memory_space<vmem>>, vector<16x128xf32>
    %c0_1 = arith.constant 0 : index
    %c0_2 = arith.constant 0 : index
    %1 = vector.load %arg2[%c0_1, %c0_2] : memref<16x128xf32, #tpu.memory_space<vmem>>, vector<16x128xf32>
    %2 = math.exp %0 : vector<16x128xf32>
    %3 = arith.mulf %1, %0 : vector<16x128xf32>
    %4 = arith.subf %2, %3 : vector<16x128xf32>
    %5 = vector.shape_cast %4 : vector<16x128xf32> to vector<2x8x128xf32>
    %cst = arith.constant dense<0.000000e+00> : vector<8x128xf32>
    %6 = vector.multi_reduction <add>, %5, %cst [0] : vector<2x8x128xf32> to vector<8x128xf32>
    %7 = vector.shape_cast %6 : vector<8x128xf32> to vector<1x8x128xf32>
    %c0_3 = arith.constant 0 : index
    %c0_4 = arith.constant 0 : index
    %c0_5 = arith.constant 0 : index
    %8 = vector.load %arg3[%c0_3, %c0_4, %c0_5] : memref<1x8x128xf32, #tpu.memory_space<vmem>>, vector<1x8x128xf32>
    tpu.vector_store %arg3[%c0_3, %c0_4, %c0_5], %7 {strides = array<i32>} : memref<1x8x128xf32, #tpu.memory_space<vmem>>, vector<1x8x128xf32>,
    return
  }
  func.func @transform_0(%arg0: i32) -> (i32, i32) {
    %c0_i32 = arith.constant 0 : i32
    %c0_i32_0 = arith.constant 0 : i32
    return %arg0, %c0_i32 : i32, i32
  }
  func.func @transform_1(%arg0: i32) -> (i32, i32) {
    %c0_i32 = arith.constant 0 : i32
    %c0_i32_0 = arith.constant 0 : i32
    return %arg0, %c0_i32 : i32, i32
  }
  func.func @transform_2(%arg0: i32) -> (i32, i32, i32) {
    %c0_i32 = arith.constant 0 : i32
    %c0_i32_0 = arith.constant 0 : i32
    %c0_i32_1 = arith.constant 0 : i32
    return %arg0, %c0_i32, %c0_i32_0 : i32, i32, i32
  }
}

</mosaic_0001>

<llo_original>
// kernel: poisson_nll_loss.1
$region0: #{poisson_nll_loss.1}
  #allocation0 [shape = 'u32[]', space=smem, size = 0x4, offset = 0x4, fixed_abs, tag = 'smem constant byte address 0x4 - core index']
  #allocation1 [shape = 'u32[144,128]{1,0:T(1,128)}', space=vmem, size = 0x12000, scoped, tag = 'internal scratch']
  %s0 = inlined_call_operand.vmem [shape: f32[16,128], index: 0, kind: input, shape index: {}]
  %s1 = inlined_call_operand.vmem [shape: f32[16,128], index: 1, kind: input, shape index: {}]
  %s2 = inlined_call_operand.vmem [shape: f32[1,8,128], index: 2, kind: output, shape index: {}]
  %s3 = sld [smem:[#allocation0]]
  $region18: #{poisson_nll_loss.1} parent=0
    _
  %s5 = ssub.s32 1, %s3
  %s6 = scalar_select 0, %s5, %s3
  // Predicated region
  $region2: #{poisson_nll_loss.1} parent=0 // pred_check
    _
  $region3: #{poisson_nll_loss.1} parent=0 // pred_check_branch
    %8 = sbr.rel (0) target = $region5
  $region4: #{poisson_nll_loss.1} parent=0 // pred_region
    _
  $region5: #{poisson_nll_loss.1} parent=0 // pred_fallthru
    _
  // Predicated region
  $region6: #{poisson_nll_loss.1} parent=0 // pred_check
    _
  $region7: #{poisson_nll_loss.1} parent=0 // pred_check_branch
    %10 = sbr.rel (0) target = $region9
  $region8: #{poisson_nll_loss.1} parent=0 // pred_region
    _
  $region9: #{poisson_nll_loss.1} parent=0 // pred_fallthru
    _
  %v11 = vld [vmem:[%s0] sm:$0xff]
  %v12 = vld [vmem:[%s0 + $0x8] sm:$0xff]
  %v13 = vld [vmem:[%s1] sm:$0xff]
  %v14 = vld [vmem:[%s1 + $0x8] sm:$0xff]
  %v15 = vmul.f32 %v11, 1.442695
  %v16 = vpow.pop %v15
  %v17 = vmul.f32 %v12, 1.442695
  %v18 = vpow.pop %v17
  %v19 = vmul.f32 %v13, %v11
  %v20 = vmul.f32 %v14, %v12
  %v21 = vsub.f32 %v16, %v19
  %v22 = vsub.f32 %v18, %v20
  %v23 = vadd.f32 %v21, %v22
  %24 = vst [vmem:[%s2] sm:$0xff] %v23
  // Predicated region
  $region10: #{poisson_nll_loss.1} parent=0 // pred_check
    _
  $region11: #{poisson_nll_loss.1} parent=0 // pred_check_branch
    %26 = sbr.rel (0) target = $region13
  $region12: #{poisson_nll_loss.1} parent=0 // pred_region
    _
  $region13: #{poisson_nll_loss.1} parent=0 // pred_fallthru
    _
  // Predicated region
  $region14: #{poisson_nll_loss.1} parent=0 // pred_check
    _
  $region15: #{poisson_nll_loss.1} parent=0 // pred_check_branch
    %28 = sbr.rel (0) target = $region17
  $region16: #{poisson_nll_loss.1} parent=0 // pred_region
    _
  $region17: #{poisson_nll_loss.1} parent=0 // pred_fallthru
    _

</llo_original>
